<compile_context>
chip_gen: v6e
topology: v6e:2x2x1
jax: 0.10.0
libtpu: 0.0.40
codegen_flags: <defaults>
</compile_context>

<pallas_src>
import functools

import jax
import jax.numpy as jnp
from jax.experimental import pallas as pl
from jax.experimental.pallas import tpu as pltpu


def _mlp_kernel(nhiddenlayers, logtransform, x_ref, *refs):
    """x_ref block : (batch_tile, in_features)   -- natural HBM layout of x
    w_k          : (out_features, in_features)   -- torch layout, resident
    b_k          : (out_features, 1)
    out_ref block: (1, batch_tile)               -- lane-dense output
    """
    out_ref = refs[-1]
    param_refs = refs[:-1]

    def act(v):
        # activation = ReLU for this instantiation of MLPMODEL
        return jnp.maximum(v, 0.0)

    x = x_ref[...].astype(jnp.float32)            # (B, in_features)

    # First hidden layer folds the layout change into the matmul:
    # contract W0 dim 1 (features) against x dim 1 (features) -> (hidden, B),
    # i.e. batch lands on the lane axis with no separate transpose pass.
    w0 = param_refs[0][...]                       # (hidden, in)
    b0 = param_refs[1][...]                       # (hidden, 1)
    h = jax.lax.dot_general(
        w0, x,
        dimension_numbers=(((1,), (1,)), ((), ())),
        preferred_element_type=jnp.float32) + b0
    h = act(h)                                    # (hidden, B), 128-lane dense

    # Remaining hidden layers: Linear -> activation.
    for layer in range(1, nhiddenlayers):
        w = param_refs[2 * layer][...]            # (hidden, hidden)
        b = param_refs[2 * layer + 1][...]        # (hidden, 1)
        h = jnp.dot(w, h, preferred_element_type=jnp.float32) + b
        h = act(h)

    # Final Linear(hidden, 1): (1, hidden) @ (hidden, B) -> (1, B), lane-dense.
    w_out = param_refs[2 * nhiddenlayers][...]    # (1, hidden)
    b_out = param_refs[2 * nhiddenlayers + 1][...]  # (1, 1)
    y = jnp.dot(w_out, h, preferred_element_type=jnp.float32) + b_out

    # torch module appends the activation after the last Linear iff not logtransform
    if not logtransform:
        y = act(y)

    out_ref[...] = y.astype(out_ref.dtype)        # unmasked full-lane store


def _round_up(x, m):
    return ((x + m - 1) // m) * m


def mlp_forward(x, params, *, nhiddenlayers, logtransform=False, batch_tile=16384):
    """x: (N, inputlayersize) f32.  params: flat [w0, b0, ..., wL, bL] with
    weights in torch (out, in) layout and biases shaped (out, 1)."""
    n, f = x.shape

    # Tile: multiple of 128 (lane-dense output, sublane-aligned x block), never
    # larger than the 128-rounded batch.  batch_tile default (16384) targets the
    # HBM roofline; sweep up to ~32-64K per generation (raise vmem_limit there).
    tile = max(128, min(_round_up(batch_tile, 128), _round_up(n, 128)))
    grid = (pl.cdiv(n, tile),)                    # partial last block, no jnp.pad

    # x streams over the batch in its natural layout; every parameter tile is
    # the full (tiny) array with a constant index_map -> DMA'd once, resident.
    in_specs = [pl.BlockSpec((tile, f), lambda i: (i, 0))]
    for p in params:
        in_specs.append(pl.BlockSpec(p.shape, lambda i: (0, 0)))

    # Lane-dense output slab in HBM: (1, n), blocked (1, tile).
    out_spec = pl.BlockSpec((1, tile), lambda i: (0, i))

    kernel = functools.partial(_mlp_kernel, nhiddenlayers, logtransform)

    out = pl.pallas_call(
        kernel,
        out_shape=jax.ShapeDtypeStruct((1, n), jnp.float32),
        grid_spec=pltpu.PrefetchScalarGridSpec(
            num_scalar_prefetch=0,
            grid=grid,
            in_specs=in_specs,
            out_specs=out_spec,
        ),
        compiler_params=pltpu.CompilerParams(
            dimension_semantics=("parallel",),    # megacore-shardable batch axis
            vmem_limit_bytes=48 << 20,            # headroom for large tiles; < 64 MiB (v7x physical)
        ),
    )(x, *params)

    # (1, n) -> (n, 1) is order-preserving and tiny.
    return out.reshape(n, 1)


def init_params(key, inputlayersize, hiddenlayersize, nhiddenlayers):
    """Deterministic init mirroring torch.nn.Linear:
    weights (out_features, in_features), biases (out_features, 1)."""
    params = []
    dims = [inputlayersize] + [hiddenlayersize] * nhiddenlayers + [1]
    for fan_in, fan_out in zip(dims[:-1], dims[1:]):
        key, kw, kb = jax.random.split(key, 3)
        bound = 1.0 / jnp.sqrt(float(fan_in))
        w = jax.random.uniform(kw, (fan_out, fan_in), jnp.float32, -bound, bound)
        b = jax.random.uniform(kb, (fan_out, 1), jnp.float32, -bound, bound)
        params.extend([w, b])
    return params


def mlp_reference(x, params, *, nhiddenlayers, logtransform=False):
    """Pure-JAX reference of the same forward pass (batch-major orientation)."""
    hp = jax.lax.Precision.HIGHEST
    h = x
    for layer in range(nhiddenlayers):
        w, b = params[2 * layer], params[2 * layer + 1]
        h = jnp.maximum(jnp.matmul(h, w.T, precision=hp) + b.T, 0.0)
    w, b = params[2 * nhiddenlayers], params[2 * nhiddenlayers + 1]
    y = jnp.matmul(h, w.T, precision=hp) + b.T
    if not logtransform:
        y = jnp.maximum(y, 0.0)
    return y


if __name__ == "__main__":
    inputlayersize = 32
    hiddenlayersize = 32
    nhiddenlayers = 2

    key = jax.random.PRNGKey(0)
    key, kx1, kx2 = jax.random.split(key, 3)
    params = init_params(key, inputlayersize, hiddenlayersize, nhiddenlayers)

    # Case 1: small demo with several grid steps (batch_tile override keeps it
    # fast; production default is 16384).
    x1 = jax.random.normal(kx1, (1024, inputlayersize), jnp.float32)
    out1 = mlp_forward(x1, params, nhiddenlayers=nhiddenlayers,
                       logtransform=False, batch_tile=256)
    out1 = jax.block_until_ready(out1)
    ref1 = mlp_reference(x1, params, nhiddenlayers=nhiddenlayers, logtransform=False)
    assert out1.shape == (1024, 1)
    assert jnp.allclose(out1, ref1, atol=1e-4, rtol=1e-4), "mismatch vs reference (case 1)"

    # Case 2: ragged batch with the default (clamped) tile -> exercises the
    # unpadded partial-block tail path.
    x2 = jax.random.normal(kx2, (300, inputlayersize), jnp.float32)
    out2 = mlp_forward(x2, params, nhiddenlayers=nhiddenlayers, logtransform=False)
    out2 = jax.block_until_ready(out2)
    ref2 = mlp_reference(x2, params, nhiddenlayers=nhiddenlayers, logtransform=False)
    assert out2.shape == (300, 1)
    assert jnp.allclose(out2, ref2, atol=1e-4, rtol=1e-4), "mismatch vs reference (case 2)"

    print("KERNEL_OK")
</pallas_src>

<mosaic_0001>
module attributes {stable_mosaic.version = 11 : i64} {
  func.func @_mlp_kernel(%arg0: i32, %arg1: memref<256x32xf32, #tpu.memory_space<vmem>>, %arg2: memref<32x32xf32, #tpu.memory_space<vmem>>, %arg3: memref<32x1xf32, #tpu.memory_space<vmem>>, %arg4: memref<32x32xf32, #tpu.memory_space<vmem>>, %arg5: memref<32x1xf32, #tpu.memory_space<vmem>>, %arg6: memref<1x32xf32, #tpu.memory_space<vmem>>, %arg7: memref<1x1xf32, #tpu.memory_space<vmem>>, %arg8: memref<1x256xf32, #tpu.memory_space<vmem>>) attributes {dimension_semantics = [#tpu.dimension_semantics<parallel>], iteration_bounds = array<i64: 4>, scalar_prefetch = 0 : i64, scratch_operands = 0 : i64, tpu.core_type = #tpu.core_type<tc>, window_params = [{transform_indices = @transform_0, window_bounds = array<i64: 256, 32>}, {pipeline_mode = #tpu.pipeline_mode<synchronous>, transform_indices = @transform_1, window_bounds = array<i64: 32, 32>}, {pipeline_mode = #tpu.pipeline_mode<synchronous>, transform_indices = @transform_2, window_bounds = array<i64: 32, 1>}, {pipeline_mode = #tpu.pipeline_mode<synchronous>, transform_indices = @transform_3, window_bounds = array<i64: 32, 32>}, {pipeline_mode = #tpu.pipeline_mode<synchronous>, transform_indices = @transform_4, window_bounds = array<i64: 32, 1>}, {pipeline_mode = #tpu.pipeline_mode<synchronous>, transform_indices = @transform_5, window_bounds = array<i64: 1, 32>}, {pipeline_mode = #tpu.pipeline_mode<synchronous>, transform_indices = @transform_6, window_bounds = array<i64: 1, 1>}, {transform_indices = @transform_7, window_bounds = array<i64: 1, 256>}]} {
    %c0 = arith.constant 0 : index
    %c0_0 = arith.constant 0 : index
    %0 = vector.load %arg1[%c0, %c0_0] : memref<256x32xf32, #tpu.memory_space<vmem>>, vector<256x32xf32>
    %c0_1 = arith.constant 0 : index
    %c0_2 = arith.constant 0 : index
    %1 = vector.load %arg2[%c0_1, %c0_2] : memref<32x32xf32, #tpu.memory_space<vmem>>, vector<32x32xf32>
    %c0_3 = arith.constant 0 : index
    %c0_4 = arith.constant 0 : index
    %2 = vector.load %arg3[%c0_3, %c0_4] : memref<32x1xf32, #tpu.memory_space<vmem>>, vector<32x1xf32>
    %cst = arith.constant dense<0.000000e+00> : vector<32x256xf32>
    %3 = tpu.matmul %1, %0, %cst {dimension_numbers = #tpu.dot_dimension_numbers<[1], [1], [0], [0], [0, 0, 1, 0], [], []>} : vector<32x32xf32>, vector<256x32xf32>, vector<32x256xf32> -> vector<32x256xf32>
    %4 = vector.broadcast %2 : vector<32x1xf32> to vector<32x256xf32>
    %5 = arith.addf %3, %4 : vector<32x256xf32>
    %cst_5 = arith.constant 0.000000e+00 : f32
    %6 = vector.broadcast %cst_5 : f32 to vector<32x256xf32>
    %7 = arith.maximumf %5, %6 : vector<32x256xf32>
    %c0_6 = arith.constant 0 : index
    %c0_7 = arith.constant 0 : index
    %8 = vector.load %arg4[%c0_6, %c0_7] : memref<32x32xf32, #tpu.memory_space<vmem>>, vector<32x32xf32>
    %c0_8 = arith.constant 0 : index
    %c0_9 = arith.constant 0 : index
    %9 = vector.load %arg5[%c0_8, %c0_9] : memref<32x1xf32, #tpu.memory_space<vmem>>, vector<32x1xf32>
    %cst_10 = arith.constant dense<0.000000e+00> : vector<32x256xf32>
    %10 = tpu.matmul %8, %7, %cst_10 {dimension_numbers = #tpu.dot_dimension_numbers<[1], [0], [0], [1], [0, 0, 1, 1], [], []>} : vector<32x32xf32>, vector<32x256xf32>, vector<32x256xf32> -> vector<32x256xf32>
    %11 = vector.broadcast %9 : vector<32x1xf32> to vector<32x256xf32>
    %12 = arith.addf %10, %11 : vector<32x256xf32>
    %cst_11 = arith.constant 0.000000e+00 : f32
    %13 = vector.broadcast %cst_11 : f32 to vector<32x256xf32>
    %14 = arith.maximumf %12, %13 : vector<32x256xf32>
    %c0_12 = arith.constant 0 : index
    %c0_13 = arith.constant 0 : index
    %15 = vector.load %arg6[%c0_12, %c0_13] : memref<1x32xf32, #tpu.memory_space<vmem>>, vector<1x32xf32>
    %c0_14 = arith.constant 0 : index
    %c0_15 = arith.constant 0 : index
    %16 = vector.load %arg7[%c0_14, %c0_15] : memref<1x1xf32, #tpu.memory_space<vmem>>, vector<1x1xf32>
    %cst_16 = arith.constant dense<0.000000e+00> : vector<1x256xf32>
    %17 = tpu.matmul %15, %14, %cst_16 {dimension_numbers = #tpu.dot_dimension_numbers<[1], [0], [0], [1], [0, 0, 1, 1], [], []>} : vector<1x32xf32>, vector<32x256xf32>, vector<1x256xf32> -> vector<1x256xf32>
    %18 = vector.broadcast %16 : vector<1x1xf32> to vector<1x256xf32>
    %19 = arith.addf %17, %18 : vector<1x256xf32>
    %cst_17 = arith.constant 0.000000e+00 : f32
    %20 = vector.broadcast %cst_17 : f32 to vector<1x256xf32>
    %21 = arith.maximumf %19, %20 : vector<1x256xf32>
    %c0_18 = arith.constant 0 : index
    %c0_19 = arith.constant 0 : index
    %22 = vector.load %arg8[%c0_18, %c0_19] : memref<1x256xf32, #tpu.memory_space<vmem>>, vector<1x256xf32>
    tpu.vector_store %arg8[%c0_18, %c0_19], %21 {strides = array<i32>} : memref<1x256xf32, #tpu.memory_space<vmem>>, vector<1x256xf32>,
    return
  }
  func.func @transform_0(%arg0: i32) -> (i32, i32) {
    %c0_i32 = arith.constant 0 : i32
    %c0_i32_0 = arith.constant 0 : i32
    return %arg0, %c0_i32 : i32, i32
  }
  func.func @transform_1(%arg0: i32) -> (i32, i32) {
    %c0_i32 = arith.constant 0 : i32
    %c0_i32_0 = arith.constant 0 : i32
    %c0_i32_1 = arith.constant 0 : i32
    return %c0_i32, %c0_i32_0 : i32, i32
  }
  func.func @transform_2(%arg0: i32) -> (i32, i32) {
    %c0_i32 = arith.constant 0 : i32
    %c0_i32_0 = arith.constant 0 : i32
    %c0_i32_1 = arith.constant 0 : i32
    return %c0_i32, %c0_i32_0 : i32, i32
  }
  func.func @transform_3(%arg0: i32) -> (i32, i32) {
    %c0_i32 = arith.constant 0 : i32
    %c0_i32_0 = arith.constant 0 : i32
    %c0_i32_1 = arith.constant 0 : i32
    return %c0_i32, %c0_i32_0 : i32, i32
  }
  func.func @transform_4(%arg0: i32) -> (i32, i32) {
    %c0_i32 = arith.constant 0 : i32
    %c0_i32_0 = arith.constant 0 : i32
    %c0_i32_1 = arith.constant 0 : i32
    return %c0_i32, %c0_i32_0 : i32, i32
  }
  func.func @transform_5(%arg0: i32) -> (i32, i32) {
    %c0_i32 = arith.constant 0 : i32
    %c0_i32_0 = arith.constant 0 : i32
    %c0_i32_1 = arith.constant 0 : i32
    return %c0_i32, %c0_i32_0 : i32, i32
  }
  func.func @transform_6(%arg0: i32) -> (i32, i32) {
    %c0_i32 = arith.constant 0 : i32
    %c0_i32_0 = arith.constant 0 : i32
    %c0_i32_1 = arith.constant 0 : i32
    return %c0_i32, %c0_i32_0 : i32, i32
  }
  func.func @transform_7(%arg0: i32) -> (i32, i32) {
    %c0_i32 = arith.constant 0 : i32
    %c0_i32_0 = arith.constant 0 : i32
    return %c0_i32, %arg0 : i32, i32
  }
}

</mosaic_0001>

<llo_original>
// kernel: tpu_custom_call.1
$region0: #{tpu_custom_call.1}
  #allocation0 [shape = 'u32[]', space=smem, size = 0x4, offset = 0x4, fixed_abs, tag = 'smem constant byte address 0x4 - core index']
  #allocation1 [shape = 'u32[144,128]{1,0:T(1,128)}', space=vmem, size = 0x12000, scoped, tag = 'internal scratch']
  #allocation2 [shape = 'f32[1,1]{1,0:T(1,128)S(1)}', space=vmem, size = 0x200, scoped, tag = 'scoped memory for tpu_custom_call.1']
  %s0 = inlined_call_operand.vmem [shape: f32[1024,32], index: 0, kind: input, shape index: {}]
  %s1 = inlined_call_operand.vmem [shape: f32[32,32], index: 1, kind: input, shape index: {}]
  %s2 = inlined_call_operand.vmem [shape: f32[32,1], index: 2, kind: input, shape index: {}]
  %s3 = inlined_call_operand.vmem [shape: f32[32,32], index: 3, kind: input, shape index: {}]
  %s4 = inlined_call_operand.vmem [shape: f32[32,1], index: 4, kind: input, shape index: {}]
  %s5 = inlined_call_operand.vmem [shape: f32[1,32], index: 5, kind: input, shape index: {}]
  %s6 = inlined_call_operand.<no memory space> [shape: f32[1,1], index: 6, kind: input, shape index: {}]
  %s7 = inlined_call_operand.hbm [shape: f32[1,1024], index: 7, kind: output, shape index: {}]
  %s8 = sld [smem:[#allocation0]]
  $region61: #{tpu_custom_call.1} parent=0
    _
  %s10 = ssub.s32 1, %s8
  %s11 = scalar_select 0, %s10, %s8
  %v12 = vstv %s6
  %13 = vst [vmem:[#allocation2] sm:$0x1] %v12
  $region1: #{tpu_custom_call.1} parent=0
    #allocation3 [shape = 'u8[2048]{0}', space=vmem, size = 0x800, scoped, tag = 'output window, operand 0']
    #allocation4 [shape = 's32[2]{0}', space=sflag, size = 0x8, scoped, tag = 'scoped memory for tpu_custom_call.1']
    %14 = vsyncpa [#allocation4], 0
    %s15 = scalar_lea.sflag [#allocation4], 1
    %16 = vsyncpa %s15, 0
    loop: start=0, step=1, limit=6
    $region2: #{tpu_custom_call.1} parent=1 // loop_pre_header
      _
    $region3: #{tpu_custom_call.1} parent=1 // loop_header
      %s18 = sphi 0, %s22
      %p19 = scmp.ge.s32.totalorder %s18, 6
      %s28 = sphi 0, %s30
      %s31 = sphi 0, %s28
      %s32 = sphi 0, %s31
      %s48 = sphi 0, %s32
      %s52 = sphi 0, %s52
      %s54 = sphi 0, %s52
      %s55 = sphi 0, %s54
      %s69 = sphi 0, %s55
      %s73 = sphi 0, %s73
      %s75 = sphi 0, %s73
      %s76 = sphi 0, %s75
      %s90 = sphi 0, %s76
      %s94 = sphi 0, %s94
      %s96 = sphi 0, %s94
      %s97 = sphi 0, %s96
      %s111 = sphi 0, %s97
      %s115 = sphi 0, %s115
      %s117 = sphi 0, %s115
      %s118 = sphi 0, %s117
      %s132 = sphi 0, %s118
      %s136 = sphi 0, %s136
      %s138 = sphi 0, %s136
      %s139 = sphi 0, %s138
      %s153 = sphi 0, %s139
      %s157 = sphi 0, %s157
      %s159 = sphi 0, %s157
      %s160 = sphi 0, %s159
      %s174 = sphi 0, %s160
      %s180 = sphi 0, %s182
      %s183 = sphi 0, %s180
      %s184 = sphi 0, %s183
      %s200 = sphi 0, %s184
    $region4: #{tpu_custom_call.1} parent=1 // loop_header_branch
      %21 = sbr.rel (%p19) target = $region8
    $region5: #{tpu_custom_call.1} parent=1 // loop_body
      %s23 = ssub.s32 %s18, 1
      %s24 = ssub.s32 %s18, 2
      %s25 = sadd.s32 %s18, 1
      %s26 = ssub.s32 %s18, %s25
      %p27 = scmp.eq.s32.totalorder %s26, 0
      %s29 = sadd.s32 %s28, 1
      %s30 = scalar_select %p27, %s28, %s29
      %p33 = pneg %p27
      %p34 = scmp.eq.s32.totalorder %s18, 3
      %p35 = por %p33, %p34
      %p36 = scmp.ne.s32.totalorder %s28, %s31
      %p37 = scmp.eq.s32.totalorder %s18, 0
      %p38 = por %p36, %p37
      %p39 = scmp.ne.s32.totalorder %s28, %s31
      %p40 = scmp.eq.s32.totalorder %s23, 3
      %p41 = por %p39, %p40
      %p42 = scmp.ne.s32.totalorder %s31, %s32
      %p43 = scmp.eq.s32.totalorder %s23, 0
      %p44 = por %p42, %p43
      %p45 = scmp.ne.s32.totalorder %s31, %s32
      %p46 = scmp.eq.s32.totalorder %s24, 3
      %p47 = por %p45, %p46
      %p49 = scmp.ne.s32.totalorder %s32, %s48
      %p50 = scmp.eq.s32.totalorder %s24, 0
      %p51 = por %p49, %p50
      %s53 = sadd.s32 %s52, 1
      %p56 = scmp.eq.s32.totalorder %s18, 3
      %p57 = scmp.ne.s32.totalorder %s52, %s54
      %p58 = scmp.eq.s32.totalorder %s18, 0
      %p59 = por %p57, %p58
      %p60 = scmp.ne.s32.totalorder %s52, %s54
      %p61 = scmp.eq.s32.totalorder %s23, 3
      %p62 = por %p60, %p61
      %p63 = scmp.ne.s32.totalorder %s54, %s55
      %p64 = scmp.eq.s32.totalorder %s23, 0
      %p65 = por %p63, %p64
      %p66 = scmp.ne.s32.totalorder %s54, %s55
      %p67 = scmp.eq.s32.totalorder %s24, 3
      %p68 = por %p66, %p67
      %p70 = scmp.ne.s32.totalorder %s55, %s69
      %p71 = scmp.eq.s32.totalorder %s24, 0
      %p72 = por %p70, %p71
      %s74 = sadd.s32 %s73, 1
      %p77 = scmp.eq.s32.totalorder %s18, 3
      %p78 = scmp.ne.s32.totalorder %s73, %s75
      %p79 = scmp.eq.s32.totalorder %s18, 0
      %p80 = por %p78, %p79
      %p81 = scmp.ne.s32.totalorder %s73, %s75
      %p82 = scmp.eq.s32.totalorder %s23, 3
      %p83 = por %p81, %p82
      %p84 = scmp.ne.s32.totalorder %s75, %s76
      %p85 = scmp.eq.s32.totalorder %s23, 0
      %p86 = por %p84, %p85
      %p87 = scmp.ne.s32.totalorder %s75, %s76
      %p88 = scmp.eq.s32.totalorder %s24, 3
      %p89 = por %p87, %p88
      %p91 = scmp.ne.s32.totalorder %s76, %s90
      %p92 = scmp.eq.s32.totalorder %s24, 0
      %p93 = por %p91, %p92
      %s95 = sadd.s32 %s94, 1
      %p98 = scmp.eq.s32.totalorder %s18, 3
      %p99 = scmp.ne.s32.totalorder %s94, %s96
      %p100 = scmp.eq.s32.totalorder %s18, 0
      %p101 = por %p99, %p100
      %p102 = scmp.ne.s32.totalorder %s94, %s96
      %p103 = scmp.eq.s32.totalorder %s23, 3
      %p104 = por %p102, %p103
      %p105 = scmp.ne.s32.totalorder %s96, %s97
      %p106 = scmp.eq.s32.totalorder %s23, 0
      %p107 = por %p105, %p106
      %p108 = scmp.ne.s32.totalorder %s96, %s97
      %p109 = scmp.eq.s32.totalorder %s24, 3
      %p110 = por %p108, %p109
      %p112 = scmp.ne.s32.totalorder %s97, %s111
      %p113 = scmp.eq.s32.totalorder %s24, 0
      %p114 = por %p112, %p113
      %s116 = sadd.s32 %s115, 1
      %p119 = scmp.eq.s32.totalorder %s18, 3
      %p120 = scmp.ne.s32.totalorder %s115, %s117
      %p121 = scmp.eq.s32.totalorder %s18, 0
      %p122 = por %p120, %p121
      %p123 = scmp.ne.s32.totalorder %s115, %s117
      %p124 = scmp.eq.s32.totalorder %s23, 3
      %p125 = por %p123, %p124
      %p126 = scmp.ne.s32.totalorder %s117, %s118
      %p127 = scmp.eq.s32.totalorder %s23, 0
      %p128 = por %p126, %p127
      %p129 = scmp.ne.s32.totalorder %s117, %s118
      %p130 = scmp.eq.s32.totalorder %s24, 3
      %p131 = por %p129, %p130
      %p133 = scmp.ne.s32.totalorder %s118, %s132
      %p134 = scmp.eq.s32.totalorder %s24, 0
      %p135 = por %p133, %p134
      %s137 = sadd.s32 %s136, 1
      %p140 = scmp.eq.s32.totalorder %s18, 3
      %p141 = scmp.ne.s32.totalorder %s136, %s138
      %p142 = scmp.eq.s32.totalorder %s18, 0
      %p143 = por %p141, %p142
      %p144 = scmp.ne.s32.totalorder %s136, %s138
      %p145 = scmp.eq.s32.totalorder %s23, 3
      %p146 = por %p144, %p145
      %p147 = scmp.ne.s32.totalorder %s138, %s139
      %p148 = scmp.eq.s32.totalorder %s23, 0
      %p149 = por %p147, %p148
      %p150 = scmp.ne.s32.totalorder %s138, %s139
      %p151 = scmp.eq.s32.totalorder %s24, 3
      %p152 = por %p150, %p151
      %p154 = scmp.ne.s32.totalorder %s139, %s153
      %p155 = scmp.eq.s32.totalorder %s24, 0
      %p156 = por %p154, %p155
      %s158 = sadd.s32 %s157, 1
      %p161 = scmp.eq.s32.totalorder %s18, 3
      %p162 = scmp.ne.s32.totalorder %s157, %s159
      %p163 = scmp.eq.s32.totalorder %s18, 0
      %p164 = por %p162, %p163
      %p165 = scmp.ne.s32.totalorder %s157, %s159
      %p166 = scmp.eq.s32.totalorder %s23, 3
      %p167 = por %p165, %p166
      %p168 = scmp.ne.s32.totalorder %s159, %s160
      %p169 = scmp.eq.s32.totalorder %s23, 0
      %p170 = por %p168, %p169
      %p171 = scmp.ne.s32.totalorder %s159, %s160
      %p172 = scmp.eq.s32.totalorder %s24, 3
      %p173 = por %p171, %p172
      %p175 = scmp.ne.s32.totalorder %s160, %s174
      %p176 = scmp.eq.s32.totalorder %s24, 0
      %p177 = por %p175, %p176
      %s178 = ssub.s32 %s18, %s25
      %p179 = scmp.eq.s32.totalorder %s178, 0
      %s181 = sadd.s32 %s180, 1
      %s182 = scalar_select %p179, %s180, %s181
      %p185 = pneg %p179
      %p186 = scmp.eq.s32.totalorder %s18, 3
      %p187 = por %p185, %p186
      %p188 = scmp.ne.s32.totalorder %s180, %s183
      %p189 = scmp.eq.s32.totalorder %s18, 0
      %p190 = por %p188, %p189
      %p191 = scmp.ne.s32.totalorder %s180, %s183
      %p192 = scmp.eq.s32.totalorder %s23, 3
      %p193 = por %p191, %p192
      %p194 = scmp.ne.s32.totalorder %s183, %s184
      %p195 = scmp.eq.s32.totalorder %s23, 0
      %p196 = por %p194, %p195
      %p197 = scmp.ne.s32.totalorder %s183, %s184
      %p198 = scmp.eq.s32.totalorder %s24, 3
      %p199 = por %p197, %p198
      %p201 = scmp.ne.s32.totalorder %s184, %s200
      %p202 = scmp.eq.s32.totalorder %s24, 0
      %p203 = por %p201, %p202
      %p204 = scmp.le.s32.totalorder 1, %s18
      %p205 = scmp.lt.s32.totalorder %s18, 5
      %p206 = pnand %p204, %p205
      %p207 = pneg %p206
      // Predicated region
      $region9: #{tpu_custom_call.1} parent=5 // pred_check
        _
      $region10: #{tpu_custom_call.1} parent=5 // pred_check_branch
        %209 = sbr.rel (%p206) target = $region12
      $region11: #{tpu_custom_call.1} parent=5 // pred_region
        %s210 = ssub.s32 %s18, 1
        // Predicated region
        $region13: #{tpu_custom_call.1} parent=11 // pred_check
          %p211 = pneg %p65
        $region14: #{tpu_custom_call.1} parent=11 // pred_check_branch
          %213 = sbr.rel (%p211) target = $region16
        $region15: #{tpu_custom_call.1} parent=11 // pred_region
          _
        $region16: #{tpu_custom_call.1} parent=11 // pred_fallthru
          _
        // Predicated region
        $region17: #{tpu_custom_call.1} parent=11 // pred_check
          %p214 = pneg %p86
        $region18: #{tpu_custom_call.1} parent=11 // pred_check_branch
          %216 = sbr.rel (%p214) target = $region20
        $region19: #{tpu_custom_call.1} parent=11 // pred_region
          _
        $region20: #{tpu_custom_call.1} parent=11 // pred_fallthru
          _
        // Predicated region
        $region21: #{tpu_custom_call.1} parent=11 // pred_check
          %p217 = pneg %p107
        $region22: #{tpu_custom_call.1} parent=11 // pred_check_branch
          %219 = sbr.rel (%p217) target = $region24
        $region23: #{tpu_custom_call.1} parent=11 // pred_region
          _
        $region24: #{tpu_custom_call.1} parent=11 // pred_fallthru
          _
        // Predicated region
        $region25: #{tpu_custom_call.1} parent=11 // pred_check
          %p220 = pneg %p128
        $region26: #{tpu_custom_call.1} parent=11 // pred_check_branch
          %222 = sbr.rel (%p220) target = $region28
        $region27: #{tpu_custom_call.1} parent=11 // pred_region
          _
        $region28: #{tpu_custom_call.1} parent=11 // pred_fallthru
          _
        // Predicated region
        $region29: #{tpu_custom_call.1} parent=11 // pred_check
          %p223 = pneg %p149
        $region30: #{tpu_custom_call.1} parent=11 // pred_check_branch
          %225 = sbr.rel (%p223) target = $region32
        $region31: #{tpu_custom_call.1} parent=11 // pred_region
          _
        $region32: #{tpu_custom_call.1} parent=11 // pred_fallthru
          _
        // Predicated region
        $region33: #{tpu_custom_call.1} parent=11 // pred_check
          %p226 = pneg %p170
        $region34: #{tpu_custom_call.1} parent=11 // pred_check_branch
          %228 = sbr.rel (%p226) target = $region36
        $region35: #{tpu_custom_call.1} parent=11 // pred_region
          _
        $region36: #{tpu_custom_call.1} parent=11 // pred_fallthru
          _
      $region12: #{tpu_custom_call.1} parent=5 // pred_fallthru
        _
      %p229 = scmp.lt.s32.totalorder %s18, 4
      // Predicated region
      $region37: #{tpu_custom_call.1} parent=5 // pred_check
        %p230 = pneg %p229
      $region38: #{tpu_custom_call.1} parent=5 // pred_check_branch
        %232 = sbr.rel (%p230) target = $region40
      $region39: #{tpu_custom_call.1} parent=5 // pred_region
        // Predicated region
        $region41: #{tpu_custom_call.1} parent=39 // pred_check
          %p233 = pneg %p38
        $region42: #{tpu_custom_call.1} parent=39 // pred_check_branch
          %235 = sbr.rel (%p233) target = $region44
        $region43: #{tpu_custom_call.1} parent=39 // pred_region
          %s236 = smul.u32 32, %s18
          %p237 = scmp.lt.s32.totalorder %s236, 127
          %s238 = scalar_select %p237, %s236, 127
          %s239 = smul.addr %s238, 8
          %s240 = scalar_lea.vmem %s0, %s239
          %s241 = smul.u32 32, %s18
        $region44: #{tpu_custom_call.1} parent=39 // pred_fallthru
          _
      $region40: #{tpu_custom_call.1} parent=5 // pred_fallthru
        _
      %p242 = scmp.le.s32.totalorder 1, %s18
      %p243 = scmp.lt.s32.totalorder %s18, 5
      %p244 = pnand %p242, %p243
      %p245 = pneg %p244
      // Predicated region
      $region45: #{tpu_custom_call.1} parent=5 // pred_check
        _
      $region46: #{tpu_custom_call.1} parent=5 // pred_check_branch
        %247 = sbr.rel (%p244) target = $region48
      $region47: #{tpu_custom_call.1} parent=5 // pred_region
        %s248 = ssub.s32 %s18, 1
        %s249 = smul.u32 32, %s23
        %p250 = scmp.lt.s32.totalorder %s249, 127
        %s251 = scalar_select %p250, %s249, 127
        %s252 = smul.addr %s251, 8
        %s253 = scalar_lea.vmem %s0, %s252
        %p254 = pneg %p44
        %p255 = pneg %p41
        %p256 = pneg %p65
        %p257 = pneg %p62
        %p258 = pneg %p86
        %p259 = pneg %p83
        %p260 = pneg %p107
        %p261 = pneg %p104
        %p262 = pneg %p128
        %p263 = pneg %p125
        %p264 = pneg %p149
        %p265 = pneg %p146
        %p266 = pneg %p170
        %p267 = pneg %p167
        %p268 = pneg %p196
        %p269 = pneg %p193
        %s270 = sand.u32 %s183, 1
        %s271 = scalar_lea.sflag [#allocation4], %s270
        %s272 = sand.u32 %s183, 1
        %s273 = smul.addr %s272, 2
        %s274 = scalar_lea.vmem [#allocation3], %s273
        %s275 = smul.u32 32, %s23
        %p276 = scmp.lt.s32.totalorder %s275, 127
        %s277 = scalar_select %p276, %s275, 127
        %s278 = smul.addr %s277, 8
        %s279 = scalar_lea.vmem %s0, %s278
        %s280 = smul.u32 32, %s23
        %s281 = smul.u32 2, %s23
        %v282 = vld [vmem:[%s279] sm:$0xff]
        %v283 = vld [vmem:[%s279 + $0x8] sm:$0xff]
        %v284 = vld [vmem:[%s279 + $0x10] sm:$0xff]
        %v285 = vld [vmem:[%s279 + $0x18] sm:$0xff]
        %v286 = vld [vmem:[%s279 + $0x20] sm:$0xff]
        %v287 = vld [vmem:[%s279 + $0x28] sm:$0xff]
        %v288 = vld [vmem:[%s279 + $0x30] sm:$0xff]
        %v289 = vld [vmem:[%s279 + $0x38] sm:$0xff]
        %v290 = vld [vmem:[%s279 + $0x40] sm:$0xff]
        %v291 = vld [vmem:[%s279 + $0x48] sm:$0xff]
        %v292 = vld [vmem:[%s279 + $0x50] sm:$0xff]
        %v293 = vld [vmem:[%s279 + $0x58] sm:$0xff]
        %v294 = vld [vmem:[%s279 + $0x60] sm:$0xff]
        %v295 = vld [vmem:[%s279 + $0x68] sm:$0xff]
        %v296 = vld [vmem:[%s279 + $0x70] sm:$0xff]
        %v297 = vld [vmem:[%s279 + $0x78] sm:$0xff]
        %v298 = vld [vmem:[%s279 + $0x80] sm:$0xff]
        %v299 = vld [vmem:[%s279 + $0x88] sm:$0xff]
        %v300 = vld [vmem:[%s279 + $0x90] sm:$0xff]
        %v301 = vld [vmem:[%s279 + $0x98] sm:$0xff]
        %v302 = vld [vmem:[%s279 + $0xa0] sm:$0xff]
        %v303 = vld [vmem:[%s279 + $0xa8] sm:$0xff]
        %v304 = vld [vmem:[%s279 + $0xb0] sm:$0xff]
        %v305 = vld [vmem:[%s279 + $0xb8] sm:$0xff]
        %v306 = vld [vmem:[%s279 + $0xc0] sm:$0xff]
        %v307 = vld [vmem:[%s279 + $0xc8] sm:$0xff]
        %v308 = vld [vmem:[%s279 + $0xd0] sm:$0xff]
        %v309 = vld [vmem:[%s279 + $0xd8] sm:$0xff]
        %v310 = vld [vmem:[%s279 + $0xe0] sm:$0xff]
        %v311 = vld [vmem:[%s279 + $0xe8] sm:$0xff]
        %v312 = vld [vmem:[%s279 + $0xf0] sm:$0xff]
        %v313 = vld [vmem:[%s279 + $0xf8] sm:$0xff]
        %v314 = vld [vmem:[%s1] sm:$0xff]
        %v315 = vld [vmem:[%s1 + $0x8] sm:$0xff]
        %v316 = vld [vmem:[%s1 + $0x10] sm:$0xff]
        %v317 = vld [vmem:[%s1 + $0x18] sm:$0xff]
        %v318 = vld [vmem:[%s2] sm:$0xff]
        %v319 = vld [vmem:[%s2 + $0x8] sm:$0xff]
        %v320 = vld [vmem:[%s2 + $0x10] sm:$0xff]
        %v321 = vld [vmem:[%s2 + $0x18] sm:$0xff]
        %323 = vset.pattern.permute.xlu0 0
        %324 = vperm.xlu0 %323, %v318
        %v325 = vpop.permute.xlu0 %324
        %328 = vset.pattern.permute.xlu0 0
        %329 = vperm.xlu0 %328, %v319
        %v330 = vpop.permute.xlu0 %329
        %333 = vset.pattern.permute.xlu0 0
        %334 = vperm.xlu0 %333, %v320
        %v335 = vpop.permute.xlu0 %334
        %338 = vset.pattern.permute.xlu0 0
        %339 = vperm.xlu0 %338, %v321
        %v340 = vpop.permute.xlu0 %339
        %vm342 = vcmask 261120
        %v344 = vsel %vm342, %v314, 0
        %v347 = vsel %vm342, %v315, 0
        %v350 = vsel %vm342, %v316, 0
        %v353 = vsel %vm342, %v317, 0
        %v356 = vsel %vm342, %v282, 0
        %v359 = vsel %vm342, %v283, 0
        %v362 = vsel %vm342, %v284, 0
        %v365 = vsel %vm342, %v285, 0
        %v368 = vsel %vm342, %v286, 0
        %v371 = vsel %vm342, %v287, 0
        %v374 = vsel %vm342, %v288, 0
        %v377 = vsel %vm342, %v289, 0
        %v380 = vsel %vm342, %v290, 0
        %v383 = vsel %vm342, %v291, 0
        %v386 = vsel %vm342, %v292, 0
        %v389 = vsel %vm342, %v293, 0
        %v392 = vsel %vm342, %v294, 0
        %v395 = vsel %vm342, %v295, 0
        %v398 = vsel %vm342, %v296, 0
        %v401 = vsel %vm342, %v297, 0
        %v404 = vsel %vm342, %v298, 0
        %v407 = vsel %vm342, %v299, 0
        %v410 = vsel %vm342, %v300, 0
        %v413 = vsel %vm342, %v301, 0
        %v416 = vsel %vm342, %v302, 0
        %v419 = vsel %vm342, %v303, 0
        %v422 = vsel %vm342, %v304, 0
        %v425 = vsel %vm342, %v305, 0
        %v428 = vsel %vm342, %v306, 0
        %v431 = vsel %vm342, %v307, 0
        %v434 = vsel %vm342, %v308, 0
        %v437 = vsel %vm342, %v309, 0
        %v440 = vsel %vm342, %v310, 0
        %v443 = vsel %vm342, %v311, 0
        %v446 = vsel %vm342, %v312, 0
        %v449 = vsel %vm342, %v313, 0
        %451 = vmatprep.subr.mxu0 0.0
        %452 = vmatpush1.xpose.msra.mxu0 %v401
        %453 = vmatprep.subr.mxu0 0.0
        %454 = vmatpush1.xpose.msra.mxu0 %v398
        %455 = vmatprep.subr.mxu0 0.0
        %456 = vmatpush1.xpose.msra.mxu0 %v395
        %457 = vmatprep.subr.mxu0 0.0
        %458 = vmatpush1.xpose.msra.mxu0 %v392
        %459 = vmatprep.subr.mxu0 0.0
        %460 = vmatpush1.xpose.msra.mxu0 %v389
        %461 = vmatprep.subr.mxu0 0.0
        %462 = vmatpush1.xpose.msra.mxu0 %v386
        %463 = vmatprep.subr.mxu0 0.0
        %464 = vmatpush1.xpose.msra.mxu0 %v383
        %465 = vmatprep.subr.mxu0 0.0
        %466 = vmatpush1.xpose.msra.mxu0 %v380
        %467 = vmatprep.subr.mxu0 0.0
        %468 = vmatpush1.xpose.msra.mxu0 %v377
        %469 = vmatprep.subr.mxu0 0.0
        %470 = vmatpush1.xpose.msra.mxu0 %v374
        %471 = vmatprep.subr.mxu0 0.0
        %472 = vmatpush1.xpose.msra.mxu0 %v371
        %473 = vmatprep.subr.mxu0 0.0
        %474 = vmatpush1.xpose.msra.mxu0 %v368
        %475 = vmatprep.subr.mxu0 0.0
        %476 = vmatpush1.xpose.msra.mxu0 %v365
        %477 = vmatprep.subr.mxu0 0.0
        %478 = vmatpush1.xpose.msra.mxu0 %v362
        %479 = vmatprep.subr.mxu0 0.0
        %480 = vmatpush1.xpose.msra.mxu0 %v359
        %481 = vmatprep.subr.mxu0 0.0
        %482 = vmatpush1.xpose.msra.mxu0 %v356
        %483 = vmatprep.subr.mxu0 0.0
        %484 = vmatpush2.xpose.msra.mxu0 %v449
        %485 = vmatprep.subr.mxu0 0.0
        %486 = vmatpush2.xpose.msra.mxu0 %v446
        %487 = vmatprep.subr.mxu0 0.0
        %488 = vmatpush2.xpose.msra.mxu0 %v443
        %489 = vmatprep.subr.mxu0 0.0
        %490 = vmatpush2.xpose.msra.mxu0 %v440
        %491 = vmatprep.subr.mxu0 0.0
        %492 = vmatpush2.xpose.msra.mxu0 %v437
        %493 = vmatprep.subr.mxu0 0.0
        %494 = vmatpush2.xpose.msra.mxu0 %v434
        %495 = vmatprep.subr.mxu0 0.0
        %496 = vmatpush2.xpose.msra.mxu0 %v431
        %497 = vmatprep.subr.mxu0 0.0
        %498 = vmatpush2.xpose.msra.mxu0 %v428
        %499 = vmatprep.subr.mxu0 0.0
        %500 = vmatpush2.xpose.msra.mxu0 %v425
        %501 = vmatprep.subr.mxu0 0.0
        %502 = vmatpush2.xpose.msra.mxu0 %v422
        %503 = vmatprep.subr.mxu0 0.0
        %504 = vmatpush2.xpose.msra.mxu0 %v419
        %505 = vmatprep.subr.mxu0 0.0
        %506 = vmatpush2.xpose.msra.mxu0 %v416
        %507 = vmatprep.subr.mxu0 0.0
        %508 = vmatpush2.xpose.msra.mxu0 %v413
        %509 = vmatprep.subr.mxu0 0.0
        %510 = vmatpush2.xpose.msra.mxu0 %v410
        %511 = vmatprep.subr.mxu0 0.0
        %512 = vmatpush2.xpose.msra.mxu0 %v407
        %513 = vmatprep.subr.mxu0 0.0
        %514 = vmatpush2.xpose.msra.mxu0 %v404
        %515 = vmatprep.mubr.f32.mxu0 0.0
        %516 = vmatmul.mubr.f32.gmra.mxu0 %v344
        %v517 = vpop.f32.mrf.mxu0
        %v518 = vadd.f32 %v325, %v517
        %v519 = vpop.f32.mrf.mxu0
        %v520 = vadd.f32 %v325, %v519
        %521 = vmatprep.mubr.f32.mxu0 0.0
        %522 = vmatmul.mubr.f32.gmra.mxu0 %v347
        %v523 = vpop.f32.mrf.mxu0
        %v524 = vadd.f32 %v330, %v523
        %v525 = vpop.f32.mrf.mxu0
        %v526 = vadd.f32 %v330, %v525
        %527 = vmatprep.mubr.f32.mxu0 0.0
        %528 = vmatmul.mubr.f32.gmra.mxu0 %v350
        %v529 = vpop.f32.mrf.mxu0
        %v530 = vadd.f32 %v335, %v529
        %v531 = vpop.f32.mrf.mxu0
        %v532 = vadd.f32 %v335, %v531
        %533 = vmatprep.mubr.f32.mxu0 0.0
        %534 = vmatmul.mubr.f32.gmra.mxu0 %v353
        %v535 = vpop.f32.mrf.mxu0
        %v536 = vadd.f32 %v340, %v535
        %v537 = vpop.f32.mrf.mxu0
        %v538 = vadd.f32 %v340, %v537
        %539 = vdwg.mxu0
        %v540 = vmax.f32 %v518, 0.0
        %v541 = vmax.f32 %v520, 0.0
        %v542 = vmax.f32 %v524, 0.0
        %v543 = vmax.f32 %v526, 0.0
        %v544 = vmax.f32 %v530, 0.0
        %v545 = vmax.f32 %v532, 0.0
        %v546 = vmax.f32 %v536, 0.0
        %v547 = vmax.f32 %v538, 0.0
        %v548 = vld [vmem:[%s3] sm:$0xff]
        %v549 = vld [vmem:[%s3 + $0x8] sm:$0xff]
        %v550 = vld [vmem:[%s3 + $0x10] sm:$0xff]
        %v551 = vld [vmem:[%s3 + $0x18] sm:$0xff]
        %v552 = vld [vmem:[%s4] sm:$0xff]
        %v553 = vld [vmem:[%s4 + $0x8] sm:$0xff]
        %v554 = vld [vmem:[%s4 + $0x10] sm:$0xff]
        %v555 = vld [vmem:[%s4 + $0x18] sm:$0xff]
        %557 = vset.pattern.permute.xlu0 0
        %558 = vperm.xlu0 %557, %v552
        %v559 = vpop.permute.xlu0 %558
        %562 = vset.pattern.permute.xlu0 0
        %563 = vperm.xlu0 %562, %v553
        %v564 = vpop.permute.xlu0 %563
        %567 = vset.pattern.permute.xlu0 0
        %568 = vperm.xlu0 %567, %v554
        %v569 = vpop.permute.xlu0 %568
        %572 = vset.pattern.permute.xlu0 0
        %573 = vperm.xlu0 %572, %v555
        %v574 = vpop.permute.xlu0 %573
        %v577 = vsel %vm342, %v548, 0
        %v580 = vsel %vm342, %v549, 0
        %v583 = vsel %vm342, %v550, 0
        %v586 = vsel %vm342, %v551, 0
        %588 = vmatprep.subr.mxu0 0.0
        %589 = vmatpush1.msra.mxu0 0.0
        %590 = vmatprep.subr.mxu0 0.0
        %591 = vmatpush1.msra.mxu0 0.0
        %592 = vmatprep.subr.mxu0 0.0
        %593 = vmatpush1.msra.mxu0 0.0
        %594 = vmatprep.subr.mxu0 0.0
        %595 = vmatpush1.msra.mxu0 0.0
        %596 = vmatprep.subr.mxu0 0.0
        %597 = vmatpush1.msra.mxu0 0.0
        %598 = vmatprep.subr.mxu0 0.0
        %599 = vmatpush1.msra.mxu0 0.0
        %600 = vmatprep.subr.mxu0 0.0
        %601 = vmatpush1.msra.mxu0 0.0
        %602 = vmatprep.subr.mxu0 0.0
        %603 = vmatpush1.msra.mxu0 0.0
        %604 = vmatprep.subr.mxu0 0.0
        %605 = vmatpush1.msra.mxu0 0.0
        %606 = vmatprep.subr.mxu0 0.0
        %607 = vmatpush1.msra.mxu0 0.0
        %608 = vmatprep.subr.mxu0 0.0
        %609 = vmatpush1.msra.mxu0 0.0
        %610 = vmatprep.subr.mxu0 0.0
        %611 = vmatpush1.msra.mxu0 0.0
        %612 = vmatprep.subr.mxu0 %v547
        %613 = vmatpush1.msra.mxu0 %v546
        %614 = vmatprep.subr.mxu0 %v545
        %615 = vmatpush1.msra.mxu0 %v544
        %616 = vmatprep.subr.mxu0 %v543
        %617 = vmatpush1.msra.mxu0 %v542
        %618 = vmatprep.subr.mxu0 %v541
        %619 = vmatpush1.msra.mxu0 %v540
        %620 = vmatprep.subr.mxu0 0.0
        %621 = vmatpush2.msra.mxu0 0.0
        %622 = vmatprep.subr.mxu0 0.0
        %623 = vmatpush2.msra.mxu0 0.0
        %624 = vmatprep.subr.mxu0 0.0
        %625 = vmatpush2.msra.mxu0 0.0
        %626 = vmatprep.subr.mxu0 0.0
        %627 = vmatpush2.msra.mxu0 0.0
        %628 = vmatprep.subr.mxu0 0.0
        %629 = vmatpush2.msra.mxu0 0.0
        %630 = vmatprep.subr.mxu0 0.0
        %631 = vmatpush2.msra.mxu0 0.0
        %632 = vmatprep.subr.mxu0 0.0
        %633 = vmatpush2.msra.mxu0 0.0
        %634 = vmatprep.subr.mxu0 0.0
        %635 = vmatpush2.msra.mxu0 0.0
        %636 = vmatprep.subr.mxu0 0.0
        %637 = vmatpush2.msra.mxu0 0.0
        %638 = vmatprep.subr.mxu0 0.0
        %639 = vmatpush2.msra.mxu0 0.0
        %640 = vmatprep.subr.mxu0 0.0
        %641 = vmatpush2.msra.mxu0 0.0
        %642 = vmatprep.subr.mxu0 0.0
        %643 = vmatpush2.msra.mxu0 0.0
        %644 = vmatprep.subr.mxu0 0.0
        %645 = vmatpush2.msra.mxu0 0.0
        %646 = vmatprep.subr.mxu0 0.0
        %647 = vmatpush2.msra.mxu0 0.0
        %648 = vmatprep.subr.mxu0 0.0
        %649 = vmatpush2.msra.mxu0 0.0
        %650 = vmatprep.subr.mxu0 0.0
        %651 = vmatpush2.msra.mxu0 0.0
        %652 = vmatprep.mubr.f32.mxu0 0.0
        %653 = vmatmul.mubr.f32.gmra.mxu0 %v577
        %v654 = vpop.f32.mrf.mxu0
        %v655 = vadd.f32 %v559, %v654
        %v656 = vpop.f32.mrf.mxu0
        %v657 = vadd.f32 %v559, %v656
        %658 = vmatprep.mubr.f32.mxu0 0.0
        %659 = vmatmul.mubr.f32.gmra.mxu0 %v580
        %v660 = vpop.f32.mrf.mxu0
        %v661 = vadd.f32 %v564, %v660
        %v662 = vpop.f32.mrf.mxu0
        %v663 = vadd.f32 %v564, %v662
        %664 = vmatprep.mubr.f32.mxu0 0.0
        %665 = vmatmul.mubr.f32.gmra.mxu0 %v583
        %v666 = vpop.f32.mrf.mxu0
        %v667 = vadd.f32 %v569, %v666
        %v668 = vpop.f32.mrf.mxu0
        %v669 = vadd.f32 %v569, %v668
        %670 = vmatprep.mubr.f32.mxu0 0.0
        %671 = vmatmul.mubr.f32.gmra.mxu0 %v586
        %v672 = vpop.f32.mrf.mxu0
        %v673 = vadd.f32 %v574, %v672
        %v674 = vpop.f32.mrf.mxu0
        %v675 = vadd.f32 %v574, %v674
        %676 = vdwg.mxu0
        %v677 = vmax.f32 %v655, 0.0
        %v678 = vmax.f32 %v657, 0.0
        %v679 = vmax.f32 %v661, 0.0
        %v680 = vmax.f32 %v663, 0.0
        %v681 = vmax.f32 %v667, 0.0
        %v682 = vmax.f32 %v669, 0.0
        %v683 = vmax.f32 %v673, 0.0
        %v684 = vmax.f32 %v675, 0.0
        %v685 = vld [vmem:[%s5] sm:$0x1]
        %v686 = vld [vmem:[#allocation2] sm:$0x1]
        %688 = vset.pattern.permute.xlu0 0
        %689 = vperm.xlu0 %688, %v686
        %v690 = vpop.permute.xlu0 %689
        %v692 = vlaneseq
        %v693 = vshrl.u32 %v692, 7
        %v694 = vsub.s32 0, %v693
        %v695 = vrot.slane %v690, %v694
        %v697 = vsel %vm342, %v685, 0
        %699 = vmatprep.subr.mxu0 0.0
        %700 = vmatpush1.msra.mxu0 0.0
        %701 = vmatprep.subr.mxu0 0.0
        %702 = vmatpush1.msra.mxu0 0.0
        %703 = vmatprep.subr.mxu0 0.0
        %704 = vmatpush1.msra.mxu0 0.0
        %705 = vmatprep.subr.mxu0 0.0
        %706 = vmatpush1.msra.mxu0 0.0
        %707 = vmatprep.subr.mxu0 0.0
        %708 = vmatpush1.msra.mxu0 0.0
        %709 = vmatprep.subr.mxu0 0.0
        %710 = vmatpush1.msra.mxu0 0.0
        %711 = vmatprep.subr.mxu0 0.0
        %712 = vmatpush1.msra.mxu0 0.0
        %713 = vmatprep.subr.mxu0 0.0
        %714 = vmatpush1.msra.mxu0 0.0
        %715 = vmatprep.subr.mxu0 0.0
        %716 = vmatpush1.msra.mxu0 0.0
        %717 = vmatprep.subr.mxu0 0.0
        %718 = vmatpush1.msra.mxu0 0.0
        %719 = vmatprep.subr.mxu0 0.0
        %720 = vmatpush1.msra.mxu0 0.0
        %721 = vmatprep.subr.mxu0 0.0
        %722 = vmatpush1.msra.mxu0 0.0
        %723 = vmatprep.subr.mxu0 %v684
        %724 = vmatpush1.msra.mxu0 %v683
        %725 = vmatprep.subr.mxu0 %v682
        %726 = vmatpush1.msra.mxu0 %v681
        %727 = vmatprep.subr.mxu0 %v680
        %728 = vmatpush1.msra.mxu0 %v679
        %729 = vmatprep.subr.mxu0 %v678
        %730 = vmatpush1.msra.mxu0 %v677
        %731 = vmatprep.subr.mxu0 0.0
        %732 = vmatpush2.msra.mxu0 0.0
        %733 = vmatprep.subr.mxu0 0.0
        %734 = vmatpush2.msra.mxu0 0.0
        %735 = vmatprep.subr.mxu0 0.0
        %736 = vmatpush2.msra.mxu0 0.0
        %737 = vmatprep.subr.mxu0 0.0
        %738 = vmatpush2.msra.mxu0 0.0
        %739 = vmatprep.subr.mxu0 0.0
        %740 = vmatpush2.msra.mxu0 0.0
        %741 = vmatprep.subr.mxu0 0.0
        %742 = vmatpush2.msra.mxu0 0.0
        %743 = vmatprep.subr.mxu0 0.0
        %744 = vmatpush2.msra.mxu0 0.0
        %745 = vmatprep.subr.mxu0 0.0
        %746 = vmatpush2.msra.mxu0 0.0
        %747 = vmatprep.subr.mxu0 0.0
        %748 = vmatpush2.msra.mxu0 0.0
        %749 = vmatprep.subr.mxu0 0.0
        %750 = vmatpush2.msra.mxu0 0.0
        %751 = vmatprep.subr.mxu0 0.0
        %752 = vmatpush2.msra.mxu0 0.0
        %753 = vmatprep.subr.mxu0 0.0
        %754 = vmatpush2.msra.mxu0 0.0
        %755 = vmatprep.subr.mxu0 0.0
        %756 = vmatpush2.msra.mxu0 0.0
        %757 = vmatprep.subr.mxu0 0.0
        %758 = vmatpush2.msra.mxu0 0.0
        %759 = vmatprep.subr.mxu0 0.0
        %760 = vmatpush2.msra.mxu0 0.0
        %761 = vmatprep.subr.mxu0 0.0
        %762 = vmatpush2.msra.mxu0 0.0
        %763 = vmatprep.mubr.f32.mxu0 0.0
        %764 = vmatmul.mubr.f32.gmra.mxu0 %v697
        %v765 = vpop.f32.mrf.mxu0
        %v766 = vadd.f32 %v695, %v765
        %v767 = vpop.f32.mrf.mxu0
        %v768 = vadd.f32 %v695, %v767
        %769 = vdwg.mxu0
        %v770 = vmax.f32 %v766, 0.0
        %v771 = vmax.f32 %v768, 0.0
        %v774 = vcombine.low %v770, %v771
        %v776 = vunpack.c.l.s4 1966171168
        %v777 = vunpack.c.0.s8 %v776
        %v778 = vlaneseq
        %v779 = vshrl.u32 %v778, 7
        %v780 = vsub.s32 %v777, %v779
        %v781 = vrot.slane %v774, %v780
        %v783 = vunpack.c.l.s4 1966171168
        %v784 = vunpack.c.0.s8 %v783
        %v785 = vlaneseq
        %v786 = vshrl.u32 %v785, 7
        %v787 = vsub.s32 %v784, %v786
        %v788 = vrot.slane %v781, %v787
        %v790 = vlaneseq
        %vm791 = vcmp.ge.s32.totalorder %v790, 0
        %vm792 = vcmp.lt.s32.totalorder %v790, 256
        %vm793 = vmand %vm791, %vm792
        %794 = vst.msk [vmem:[%s274] sm:$0x3] %vm793, %v788
        %s795 = sand.u32 %s183, 1
        %s796 = scalar_lea.sflag [#allocation4], %s795
        %s797 = sand.u32 %s183, 1
        %s798 = smul.addr %s797, 2
        %s799 = scalar_lea.vmem [#allocation3], %s798
        // Predicated region
        $region49: #{tpu_custom_call.1} parent=47 // pred_check
          %p800 = pneg %p193
        $region50: #{tpu_custom_call.1} parent=47 // pred_check_branch
          %802 = sbr.rel (%p800) target = $region52
        $region51: #{tpu_custom_call.1} parent=47 // pred_region
          %s803 = smul.u32 2, %s23
          %s805 = ssub.s32 32, 32
          %806 = vsyncadd %s796, %s805
          %s807 = smul.addr %s803, 16
          %s808 = scalar_lea.hbm %s7, %s807
          %s810 = sshll.u32 %s799, 4
          %s811 = int_to_ptr.vmem [resolvable:$true] %s810
          %813 = dma.vmem_to_hbm [thread:$0]  %s811, 32, %s808, %s796
        $region52: #{tpu_custom_call.1} parent=47 // pred_fallthru
          _
      $region48: #{tpu_custom_call.1} parent=5 // pred_fallthru
        _
      %p814 = scmp.le.s32.totalorder 2, %s18
      // Predicated region
      $region53: #{tpu_custom_call.1} parent=5 // pred_check
        %p815 = pneg %p814
      $region54: #{tpu_custom_call.1} parent=5 // pred_check_branch
        %817 = sbr.rel (%p815) target = $region56
      $region55: #{tpu_custom_call.1} parent=5 // pred_region
        %s818 = ssub.s32 %s18, 2
        // Predicated region
        $region57: #{tpu_custom_call.1} parent=55 // pred_check
          %p819 = pneg %p199
        $region58: #{tpu_custom_call.1} parent=55 // pred_check_branch
          %821 = sbr.rel (%p819) target = $region60
        $region59: #{tpu_custom_call.1} parent=55 // pred_region
          %s822 = sand.u32 %s184, 1
          %s823 = scalar_lea.sflag [#allocation4], %s822
          %s824 = sand.u32 %s184, 1
          %s825 = smul.addr %s824, 2
          %s826 = scalar_lea.vmem [#allocation3], %s825
          %827 = dma.done %s823, 32
        $region60: #{tpu_custom_call.1} parent=55 // pred_fallthru
          _
      $region56: #{tpu_custom_call.1} parent=5 // pred_fallthru
        _
    $region6: #{tpu_custom_call.1} parent=1 // loop_footer
      %s22 = sadd.s32 1, %s18
    $region7: #{tpu_custom_call.1} parent=1 // loop_footer_branch
      %17 = sbr.rel target = $region3
    $region8: #{tpu_custom_call.1} parent=1 // loop_exit
      _
    %828 = vsyncpa [#allocation4], 1
    %s829 = scalar_lea.sflag [#allocation4], 1
    %830 = vsyncpa %s829, 1

</llo_original>
